<compile_context>
chip_gen: v7x
topology: tpu7x:2x2x1
jax: 0.10.0
libtpu: 0.0.40
codegen_flags: <defaults>
</compile_context>

<pallas_src>
import functools

import jax
import jax.numpy as jnp
from jax.experimental import pallas as pl
from jax.experimental.pallas import tpu as pltpu

NEG_SLOPE = 0.01          # nn.LeakyReLU default
BN_EPS = 1e-5             # nn.BatchNorm1d default
CNN_CHANNELS = 4
CNN_KERNEL = 3


def _leaky_relu(v):
    return jnp.where(v > 0, v, NEG_SLOPE * v)


def feature_extractor_kernel(data_ref, pf_ref, w_ref, o_ref, *, IN, L, H1, H2):
    """
    data_ref : (B, IN+L)        VMEM f32   [x | budget | learning_curve]
    pf_ref   : (3+12, H2)       VMEM f32   row0 gamma, row1 beta, row2 b2_eff,
                                           rows 3+c*3+k = conv weight cw[k,c] lane-broadcast
    w_ref    : (IN+H1+4, H2)    VMEM bf16  rows [0,IN): w1 (lanes [0,H1)); rows [IN,IN+H1+4): w2
    o_ref    : (B, H2)          VMEM f32
    """
    B = data_ref.shape[0]
    Lout = L - (CNN_KERNEL - 1)

    # ---- fc1 over [x, budget]: single bf16 MXU matmul, f32 accumulate ----
    # (fc1 bias omitted: it cancels exactly under training-mode BatchNorm.)
    xb = data_ref[:, 0:IN].astype(jnp.bfloat16)
    w1 = w_ref[0:IN, 0:H1]                                    # bf16, tile-aligned slice
    h = jnp.dot(xb, w1, preferred_element_type=jnp.float32)   # (B, H1) f32

    # ---- BatchNorm1d (training mode, biased batch stats), one pass, exact f32 ----
    inv_b = 1.0 / B
    s1 = jnp.sum(h, axis=0, keepdims=True)
    s2 = jnp.sum(h * h, axis=0, keepdims=True)
    mean = s1 * inv_b
    var = jnp.maximum(s2 * inv_b - mean * mean, 0.0)          # clamp: one-pass cancellation
    gamma = pf_ref[0:1, 0:H1]
    beta = pf_ref[1:2, 0:H1]
    h = (h - mean) * jax.lax.rsqrt(var + BN_EPS) * gamma + beta
    h = _leaky_relu(h)

    # ---- Conv1d(1->4, k=3) + AdaptiveMaxPool1d(1) -> (B, 4) ----
    # Conv bias already folded into b2_eff (max over positions commutes with a constant).
    taps = [data_ref[:, IN + k: IN + k + Lout] for k in range(CNN_KERNEL)]   # 3x (B, Lout)
    cols = []
    for c in range(CNN_CHANNELS):
        r = 3 + c * CNN_KERNEL
        acc = pf_ref[r:r + 1, 0:Lout] * taps[0]               # (1,Lout) bcast * (B,Lout)
        for k in range(1, CNN_KERNEL):
            acc = acc + pf_ref[r + k:r + k + 1, 0:Lout] * taps[k]
        cols.append(jnp.max(acc, axis=1, keepdims=True))      # adaptive max pool -> (B,1)
    feat = jnp.concatenate(cols, axis=1)                      # (B, 4) f32

    # ---- fc2: MLP branch + learning-curve branch, two bf16 MXU matmuls + bias ----
    w2_mlp = w_ref[IN:IN + H1, :]                             # (H1, H2) bf16
    w2_lc = w_ref[IN + H1:IN + H1 + CNN_CHANNELS, :]          # (4,  H2) bf16
    b2 = pf_ref[2:3, 0:H2]                                    # conv bias folded in
    y = (jnp.dot(h.astype(jnp.bfloat16), w2_mlp, preferred_element_type=jnp.float32)
         + jnp.dot(feat.astype(jnp.bfloat16), w2_lc, preferred_element_type=jnp.float32)
         + b2)

    o_ref[...] = _leaky_relu(y)


def pack_params(params):
    """Pack static parameters into two DMA slabs. Call ONCE, reuse across forward calls."""
    IN, H1 = params["w1"].shape
    H2 = params["b2"].shape[1]

    def pad_lanes(a):
        return jnp.pad(a, ((0, 0), (0, H2 - a.shape[1])))

    gamma = params["bn"][0:1]
    beta = params["bn"][1:2]
    # Fold the conv bias into the fc2 bias: max_t(conv + cb) = max_t(conv) + cb.
    w2_lc_f32 = params["w2"][H1:H1 + CNN_CHANNELS].astype(jnp.float32)
    b2_eff = params["b2"] + params["conv_b"] @ w2_lc_f32                       # (1, H2)
    # Conv weights as lane-broadcast rows: row index c*K + k holds cw[k, c].
    conv_rows = jnp.broadcast_to(
        params["conv_w"].T.reshape(CNN_CHANNELS * CNN_KERNEL, 1),
        (CNN_CHANNELS * CNN_KERNEL, H2)).astype(jnp.float32)

    pf32 = jnp.concatenate([pad_lanes(gamma), pad_lanes(beta), b2_eff, conv_rows], axis=0)

    w1_padded = jnp.pad(params["w1"], ((0, 0), (0, H2 - H1)))                  # bf16 (IN, H2)
    wbf16 = jnp.concatenate([w1_padded, params["w2"]], axis=0)                 # (IN+H1+4, H2)

    return {"pf32": pf32, "wbf16": wbf16, "dims": (IN, H1, H2)}


def neural_feature_extractor(x, budgets, learning_curves, packed):
    """x: (B, input_size-1), budgets: (B,), learning_curves: (B, L) -> (B, layer2_units).

    Whole batch processed as one block (required for correct training-mode BN statistics).
    """
    B = x.shape[0]
    L = learning_curves.shape[1]
    IN, H1, H2 = packed["dims"]
    Lout = L - (CNN_KERNEL - 1)

    # Per-call data slab: [x | budget | learning_curve] -> single (B, IN+L) DMA.
    data = jnp.concatenate([x, budgets[:, None], learning_curves], axis=1)

    kernel = functools.partial(feature_extractor_kernel, IN=IN, L=L, H1=H1, H2=H2)

    flops = (2 * B * IN * H1
             + 2 * B * (H1 + CNN_CHANNELS) * H2
             + 2 * B * Lout * CNN_KERNEL * CNN_CHANNELS)
    bytes_accessed = (data.size * 4 + packed["pf32"].size * 4
                      + packed["wbf16"].size * 2 + B * H2 * 4)
    cost = pl.CostEstimate(flops=flops, transcendentals=H1, bytes_accessed=bytes_accessed)

    vmem = pl.BlockSpec(memory_space=pltpu.MemorySpace.VMEM)
    return pl.pallas_call(
        kernel,
        out_shape=jax.ShapeDtypeStruct((B, H2), jnp.float32),
        in_specs=[vmem, vmem, vmem],      # data slab, f32 param slab, bf16 weight slab
        out_specs=vmem,
        cost_estimate=cost,
    )(data, packed["pf32"], packed["wbf16"])


def make_params(key, input_size, layer1_units=128, layer2_units=256):
    ks = jax.random.split(key, 8)
    scale = 0.1
    return {
        # fc1: Linear(input_size -> layer1_units); stored transposed (in, out), bf16.
        "w1": (scale * jax.random.normal(ks[0], (input_size, layer1_units), jnp.float32)
               ).astype(jnp.bfloat16),
        # fc1 bias: only used by the reference — cancels exactly under training-mode BN.
        "b1": scale * jax.random.normal(ks[1], (1, layer1_units), jnp.float32),
        # bn1 affine params: row 0 gamma, row 1 beta.
        "bn": jnp.concatenate(
            [1.0 + scale * jax.random.normal(ks[2], (1, layer1_units), jnp.float32),
             scale * jax.random.normal(ks[3], (1, layer1_units), jnp.float32)], axis=0),
        # Conv1d(1 -> 4, kernel=3): weight stored as (k, out_channel), bias (1, out_channel).
        "conv_w": scale * jax.random.normal(ks[4], (CNN_KERNEL, CNN_CHANNELS), jnp.float32),
        "conv_b": scale * jax.random.normal(ks[5], (1, CNN_CHANNELS), jnp.float32),
        # fc2: Linear(layer1_units + 4 -> layer2_units); stored transposed, bf16.
        "w2": (scale * jax.random.normal(
            ks[6], (layer1_units + CNN_CHANNELS, layer2_units), jnp.float32)
               ).astype(jnp.bfloat16),
        "b2": scale * jax.random.normal(ks[7], (1, layer2_units), jnp.float32),
    }


def reference_forward(x, budgets, learning_curves, params):
    """Pure-JAX reference mirroring the PyTorch forward (training-mode BatchNorm, f32 math)."""
    w1 = params["w1"].astype(jnp.float32)
    w2 = params["w2"].astype(jnp.float32)
    gamma, beta = params["bn"][0:1], params["bn"][1:2]
    cw, cb = params["conv_w"], params["conv_b"]

    xb = jnp.concatenate([x, budgets[:, None]], axis=1)
    h = xb @ w1 + params["b1"]
    mean = h.mean(axis=0, keepdims=True)
    var = ((h - mean) ** 2).mean(axis=0, keepdims=True)
    h = (h - mean) / jnp.sqrt(var + BN_EPS) * gamma + beta
    h = jnp.where(h > 0, h, NEG_SLOPE * h)

    L = learning_curves.shape[1]
    Lout = L - (CNN_KERNEL - 1)
    conv = sum(learning_curves[:, k:k + Lout, None] * cw[k][None, None, :]
               for k in range(CNN_KERNEL)) + cb[None, :, :]
    lc_feat = conv.max(axis=1)                                  # (B, 4)

    z = jnp.concatenate([h, lc_feat], axis=1) @ w2 + params["b2"]
    return jnp.where(z > 0, z, NEG_SLOPE * z)


if __name__ == "__main__":
    key = jax.random.PRNGKey(0)
    k_x, k_b, k_lc, k_p = jax.random.split(key, 4)

    B = 8                 # batch
    INPUT_SIZE = 16       # fc1 input size (hyperparameter features + budget)
    D = INPUT_SIZE - 1    # raw hyperparameter feature dim
    L = 12                # learning-curve length

    x = jax.random.normal(k_x, (B, D), jnp.float32)
    budgets = jax.random.uniform(k_b, (B,), jnp.float32)
    learning_curves = jax.random.uniform(k_lc, (B, L), jnp.float32)
    params = make_params(k_p, INPUT_SIZE)
    packed = pack_params(params)      # packed once; reused across calls (weights stay bf16)

    out = neural_feature_extractor(x, budgets, learning_curves, packed)
    out = jax.block_until_ready(out)

    ref = reference_forward(x, budgets, learning_curves, params)
    assert out.shape == (B, 256), out.shape
    # Slightly wider tolerance than before: activations are fed to the MXU in bf16 now.
    assert jnp.allclose(out, ref, atol=3e-2, rtol=2e-2), float(jnp.abs(out - ref).max())

    print("KERNEL_OK")
</pallas_src>

<mosaic_0001>
module attributes {stable_mosaic.version = 11 : i64} {
  func.func @feature_extractor_kernel(%arg0: memref<8x28xf32, #tpu.memory_space<vmem>>, %arg1: memref<15x256xf32, #tpu.memory_space<vmem>>, %arg2: memref<148x256xbf16, #tpu.memory_space<vmem>>, %arg3: memref<8x256xf32, #tpu.memory_space<vmem>>) attributes {dimension_semantics = [], scalar_prefetch = 0 : i64, scratch_operands = 0 : i64, tpu.core_type = #tpu.core_type<tc>} {
    %c0 = arith.constant 0 : index
    %c0_0 = arith.constant 0 : index
    %0 = vector.load %arg0[%c0, %c0_0] : memref<8x28xf32, #tpu.memory_space<vmem>>, vector<8x16xf32>
    %1 = arith.truncf %0 : vector<8x16xf32> to vector<8x16xbf16>
    %c0_1 = arith.constant 0 : index
    %c0_2 = arith.constant 0 : index
    %2 = vector.load %arg2[%c0_1, %c0_2] : memref<148x256xbf16, #tpu.memory_space<vmem>>, vector<16x128xbf16>
    %cst = arith.constant dense<0.000000e+00> : vector<8x128xf32>
    %3 = tpu.matmul %1, %2, %cst {dimension_numbers = #tpu.dot_dimension_numbers<[1], [0], [0], [1], [0, 0, 1, 1], [], []>} : vector<8x16xbf16>, vector<16x128xbf16>, vector<8x128xf32> -> vector<8x128xf32>
    %cst_3 = arith.constant dense<0.000000e+00> : vector<128xf32>
    %4 = vector.multi_reduction <add>, %3, %cst_3 [0] : vector<8x128xf32> to vector<128xf32>
    %5 = vector.shape_cast %4 : vector<128xf32> to vector<1x128xf32>
    %6 = arith.mulf %3, %3 : vector<8x128xf32>
    %cst_4 = arith.constant dense<0.000000e+00> : vector<128xf32>
    %7 = vector.multi_reduction <add>, %6, %cst_4 [0] : vector<8x128xf32> to vector<128xf32>
    %8 = vector.shape_cast %7 : vector<128xf32> to vector<1x128xf32>
    %cst_5 = arith.constant 1.250000e-01 : f32
    %9 = vector.broadcast %cst_5 : f32 to vector<1x128xf32>
    %10 = arith.mulf %5, %9 : vector<1x128xf32>
    %cst_6 = arith.constant 1.250000e-01 : f32
    %11 = vector.broadcast %cst_6 : f32 to vector<1x128xf32>
    %12 = arith.mulf %8, %11 : vector<1x128xf32>
    %13 = arith.mulf %10, %10 : vector<1x128xf32>
    %14 = arith.subf %12, %13 : vector<1x128xf32>
    %cst_7 = arith.constant 0.000000e+00 : f32
    %15 = vector.broadcast %cst_7 : f32 to vector<1x128xf32>
    %16 = arith.maximumf %14, %15 : vector<1x128xf32>
    %c0_8 = arith.constant 0 : index
    %c0_9 = arith.constant 0 : index
    %17 = vector.load %arg1[%c0_8, %c0_9] : memref<15x256xf32, #tpu.memory_space<vmem>>, vector<1x128xf32>
    %c1 = arith.constant 1 : index
    %c0_10 = arith.constant 0 : index
    %18 = vector.load %arg1[%c1, %c0_10] : memref<15x256xf32, #tpu.memory_space<vmem>>, vector<1x128xf32>
    %19 = vector.broadcast %10 : vector<1x128xf32> to vector<8x128xf32>
    %20 = arith.subf %3, %19 : vector<8x128xf32>
    %cst_11 = arith.constant 9.99999974E-6 : f32
    %21 = vector.broadcast %cst_11 : f32 to vector<1x128xf32>
    %22 = arith.addf %16, %21 : vector<1x128xf32>
    %23 = math.rsqrt %22 : vector<1x128xf32>
    %24 = vector.broadcast %23 : vector<1x128xf32> to vector<8x128xf32>
    %25 = arith.mulf %20, %24 : vector<8x128xf32>
    %26 = vector.broadcast %17 : vector<1x128xf32> to vector<8x128xf32>
    %27 = arith.mulf %25, %26 : vector<8x128xf32>
    %28 = vector.broadcast %18 : vector<1x128xf32> to vector<8x128xf32>
    %29 = arith.addf %27, %28 : vector<8x128xf32>
    %cst_12 = arith.constant 0.000000e+00 : f32
    %30 = vector.broadcast %cst_12 : f32 to vector<8x128xf32>
    %31 = arith.cmpf ogt, %29, %30 : vector<8x128xf32>
    %cst_13 = arith.constant 0.00999999977 : f32
    %32 = vector.broadcast %cst_13 : f32 to vector<8x128xf32>
    %33 = arith.mulf %32, %29 : vector<8x128xf32>
    %34 = arith.select %31, %29, %33 : vector<8x128xi1>, vector<8x128xf32>
    %c0_14 = arith.constant 0 : index
    %c16 = arith.constant 16 : index
    %35 = vector.load %arg0[%c0_14, %c16] : memref<8x28xf32, #tpu.memory_space<vmem>>, vector<8x10xf32>
    %c0_15 = arith.constant 0 : index
    %c17 = arith.constant 17 : index
    %36 = vector.load %arg0[%c0_15, %c17] : memref<8x28xf32, #tpu.memory_space<vmem>>, vector<8x10xf32>
    %c0_16 = arith.constant 0 : index
    %c18 = arith.constant 18 : index
    %37 = vector.load %arg0[%c0_16, %c18] : memref<8x28xf32, #tpu.memory_space<vmem>>, vector<8x10xf32>
    %c3 = arith.constant 3 : index
    %c0_17 = arith.constant 0 : index
    %38 = vector.load %arg1[%c3, %c0_17] : memref<15x256xf32, #tpu.memory_space<vmem>>, vector<1x10xf32>
    %39 = vector.broadcast %38 : vector<1x10xf32> to vector<8x10xf32>
    %40 = arith.mulf %39, %35 : vector<8x10xf32>
    %c4 = arith.constant 4 : index
    %c0_18 = arith.constant 0 : index
    %41 = vector.load %arg1[%c4, %c0_18] : memref<15x256xf32, #tpu.memory_space<vmem>>, vector<1x10xf32>
    %42 = vector.broadcast %41 : vector<1x10xf32> to vector<8x10xf32>
    %43 = arith.mulf %42, %36 : vector<8x10xf32>
    %44 = arith.addf %40, %43 : vector<8x10xf32>
    %c5 = arith.constant 5 : index
    %c0_19 = arith.constant 0 : index
    %45 = vector.load %arg1[%c5, %c0_19] : memref<15x256xf32, #tpu.memory_space<vmem>>, vector<1x10xf32>
    %46 = vector.broadcast %45 : vector<1x10xf32> to vector<8x10xf32>
    %47 = arith.mulf %46, %37 : vector<8x10xf32>
    %48 = arith.addf %44, %47 : vector<8x10xf32>
    %cst_20 = arith.constant dense<0xFF800000> : vector<8xf32>
    %49 = vector.multi_reduction <maximumf>, %48, %cst_20 [1] : vector<8x10xf32> to vector<8xf32>
    %50 = vector.shape_cast %49 : vector<8xf32> to vector<8x1xf32>
    %c6 = arith.constant 6 : index
    %c0_21 = arith.constant 0 : index
    %51 = vector.load %arg1[%c6, %c0_21] : memref<15x256xf32, #tpu.memory_space<vmem>>, vector<1x10xf32>
    %52 = vector.broadcast %51 : vector<1x10xf32> to vector<8x10xf32>
    %53 = arith.mulf %52, %35 : vector<8x10xf32>
    %c7 = arith.constant 7 : index
    %c0_22 = arith.constant 0 : index
    %54 = vector.load %arg1[%c7, %c0_22] : memref<15x256xf32, #tpu.memory_space<vmem>>, vector<1x10xf32>
    %55 = vector.broadcast %54 : vector<1x10xf32> to vector<8x10xf32>
    %56 = arith.mulf %55, %36 : vector<8x10xf32>
    %57 = arith.addf %53, %56 : vector<8x10xf32>
    %c8 = arith.constant 8 : index
    %c0_23 = arith.constant 0 : index
    %58 = vector.load %arg1[%c8, %c0_23] : memref<15x256xf32, #tpu.memory_space<vmem>>, vector<1x10xf32>
    %59 = vector.broadcast %58 : vector<1x10xf32> to vector<8x10xf32>
    %60 = arith.mulf %59, %37 : vector<8x10xf32>
    %61 = arith.addf %57, %60 : vector<8x10xf32>
    %cst_24 = arith.constant dense<0xFF800000> : vector<8xf32>
    %62 = vector.multi_reduction <maximumf>, %61, %cst_24 [1] : vector<8x10xf32> to vector<8xf32>
    %63 = vector.shape_cast %62 : vector<8xf32> to vector<8x1xf32>
    %c9 = arith.constant 9 : index
    %c0_25 = arith.constant 0 : index
    %64 = vector.load %arg1[%c9, %c0_25] : memref<15x256xf32, #tpu.memory_space<vmem>>, vector<1x10xf32>
    %65 = vector.broadcast %64 : vector<1x10xf32> to vector<8x10xf32>
    %66 = arith.mulf %65, %35 : vector<8x10xf32>
    %c10 = arith.constant 10 : index
    %c0_26 = arith.constant 0 : index
    %67 = vector.load %arg1[%c10, %c0_26] : memref<15x256xf32, #tpu.memory_space<vmem>>, vector<1x10xf32>
    %68 = vector.broadcast %67 : vector<1x10xf32> to vector<8x10xf32>
    %69 = arith.mulf %68, %36 : vector<8x10xf32>
    %70 = arith.addf %66, %69 : vector<8x10xf32>
    %c11 = arith.constant 11 : index
    %c0_27 = arith.constant 0 : index
    %71 = vector.load %arg1[%c11, %c0_27] : memref<15x256xf32, #tpu.memory_space<vmem>>, vector<1x10xf32>
    %72 = vector.broadcast %71 : vector<1x10xf32> to vector<8x10xf32>
    %73 = arith.mulf %72, %37 : vector<8x10xf32>
    %74 = arith.addf %70, %73 : vector<8x10xf32>
    %cst_28 = arith.constant dense<0xFF800000> : vector<8xf32>
    %75 = vector.multi_reduction <maximumf>, %74, %cst_28 [1] : vector<8x10xf32> to vector<8xf32>
    %76 = vector.shape_cast %75 : vector<8xf32> to vector<8x1xf32>
    %c12 = arith.constant 12 : index
    %c0_29 = arith.constant 0 : index
    %77 = vector.load %arg1[%c12, %c0_29] : memref<15x256xf32, #tpu.memory_space<vmem>>, vector<1x10xf32>
    %78 = vector.broadcast %77 : vector<1x10xf32> to vector<8x10xf32>
    %79 = arith.mulf %78, %35 : vector<8x10xf32>
    %c13 = arith.constant 13 : index
    %c0_30 = arith.constant 0 : index
    %80 = vector.load %arg1[%c13, %c0_30] : memref<15x256xf32, #tpu.memory_space<vmem>>, vector<1x10xf32>
    %81 = vector.broadcast %80 : vector<1x10xf32> to vector<8x10xf32>
    %82 = arith.mulf %81, %36 : vector<8x10xf32>
    %83 = arith.addf %79, %82 : vector<8x10xf32>
    %c14 = arith.constant 14 : index
    %c0_31 = arith.constant 0 : index
    %84 = vector.load %arg1[%c14, %c0_31] : memref<15x256xf32, #tpu.memory_space<vmem>>, vector<1x10xf32>
    %85 = vector.broadcast %84 : vector<1x10xf32> to vector<8x10xf32>
    %86 = arith.mulf %85, %37 : vector<8x10xf32>
    %87 = arith.addf %83, %86 : vector<8x10xf32>
    %cst_32 = arith.constant dense<0xFF800000> : vector<8xf32>
    %88 = vector.multi_reduction <maximumf>, %87, %cst_32 [1] : vector<8x10xf32> to vector<8xf32>
    %89 = vector.shape_cast %88 : vector<8xf32> to vector<8x1xf32>
    %90 = tpu.concatenate %50, %63, %76, %89 in 1 : vector<8x1xf32>, vector<8x1xf32>, vector<8x1xf32>, vector<8x1xf32> -> vector<8x4xf32>
    %c16_33 = arith.constant 16 : index
    %c0_34 = arith.constant 0 : index
    %91 = vector.load %arg2[%c16_33, %c0_34] : memref<148x256xbf16, #tpu.memory_space<vmem>>, vector<128x256xbf16>
    %c144 = arith.constant 144 : index
    %c0_35 = arith.constant 0 : index
    %92 = vector.load %arg2[%c144, %c0_35] : memref<148x256xbf16, #tpu.memory_space<vmem>>, vector<4x256xbf16>
    %c2 = arith.constant 2 : index
    %c0_36 = arith.constant 0 : index
    %93 = vector.load %arg1[%c2, %c0_36] : memref<15x256xf32, #tpu.memory_space<vmem>>, vector<1x256xf32>
    %94 = arith.truncf %34 : vector<8x128xf32> to vector<8x128xbf16>
    %cst_37 = arith.constant dense<0.000000e+00> : vector<8x256xf32>
    %95 = tpu.matmul %94, %91, %cst_37 {dimension_numbers = #tpu.dot_dimension_numbers<[1], [0], [0], [1], [0, 0, 1, 1], [], []>} : vector<8x128xbf16>, vector<128x256xbf16>, vector<8x256xf32> -> vector<8x256xf32>
    %96 = arith.truncf %90 : vector<8x4xf32> to vector<8x4xbf16>
    %cst_38 = arith.constant dense<0.000000e+00> : vector<8x256xf32>
    %97 = tpu.matmul %96, %92, %cst_38 {dimension_numbers = #tpu.dot_dimension_numbers<[1], [0], [0], [1], [0, 0, 1, 1], [], []>} : vector<8x4xbf16>, vector<4x256xbf16>, vector<8x256xf32> -> vector<8x256xf32>
    %98 = arith.addf %95, %97 : vector<8x256xf32>
    %99 = vector.broadcast %93 : vector<1x256xf32> to vector<8x256xf32>
    %100 = arith.addf %98, %99 : vector<8x256xf32>
    %cst_39 = arith.constant 0.000000e+00 : f32
    %101 = vector.broadcast %cst_39 : f32 to vector<8x256xf32>
    %102 = arith.cmpf ogt, %100, %101 : vector<8x256xf32>
    %cst_40 = arith.constant 0.00999999977 : f32
    %103 = vector.broadcast %cst_40 : f32 to vector<8x256xf32>
    %104 = arith.mulf %103, %100 : vector<8x256xf32>
    %105 = arith.select %102, %100, %104 : vector<8x256xi1>, vector<8x256xf32>
    %c0_41 = arith.constant 0 : index
    %c0_42 = arith.constant 0 : index
    %106 = vector.load %arg3[%c0_41, %c0_42] : memref<8x256xf32, #tpu.memory_space<vmem>>, vector<8x256xf32>
    tpu.vector_store %arg3[%c0_41, %c0_42], %105 {strides = array<i32>} : memref<8x256xf32, #tpu.memory_space<vmem>>, vector<8x256xf32>,
    return
  }
}

</mosaic_0001>

<llo_original>
// kernel: tpu_custom_call.1
$region0: #{tpu_custom_call.1}
  #allocation0 [shape = 'u32[]', space=smem, size = 0x4, offset = 0x4, fixed_abs, tag = 'smem constant byte address 0x4 - core index']
  #allocation1 [shape = 'u32[144,128]{1,0:T(1,128)}', space=vmem, size = 0x12000, scoped, tag = 'internal scratch']
  %s0 = inlined_call_operand.hbm [shape: f32[8,28], index: 0, kind: input, shape index: {}]
  %s1 = inlined_call_operand.hbm [shape: f32[15,256], index: 1, kind: input, shape index: {}]
  %s2 = inlined_call_operand.hbm [shape: bf16[148,256], index: 2, kind: input, shape index: {}]
  %s3 = inlined_call_operand.hbm [shape: f32[8,256], index: 3, kind: output, shape index: {}]
  %s4 = sld [smem:[#allocation0]]
  $region34: #{tpu_custom_call.1} parent=0
    _
  %s6 = ssub.s32 1, %s4
  %s7 = scalar_select 0, %s6, %s4
  $region1: #{tpu_custom_call.1} parent=0
    #allocation2 [shape = 'u8[4096]{0}', space=vmem, size = 0x1000, scoped, tag = 'input window, operand 0, single buffered']
    #allocation3 [shape = 's32[1]{0}', space=sflag, size = 0x4, scoped, tag = 'scoped memory for tpu_custom_call.1']
    #allocation4 [shape = 's32[1]{0}', space=sflag, size = 0x4, scoped, tag = 'scoped memory for tpu_custom_call.1']
    #allocation5 [shape = 'u8[16384]{0}', space=vmem, size = 0x4000, scoped, tag = 'input window, operand 1, single buffered']
    #allocation6 [shape = 's32[1]{0}', space=sflag, size = 0x4, scoped, tag = 'scoped memory for tpu_custom_call.1']
    #allocation7 [shape = 'u8[77824]{0}', space=vmem, size = 0x13000, scoped, tag = 'input window, operand 2, single buffered']
    #allocation8 [shape = 'u8[8192]{0}', space=vmem, size = 0x2000, scoped, tag = 'output window, operand 0, single buffered']
    %8 = vsyncpa [#allocation3], 0
    %9 = vsyncpa [#allocation6], 0
    %10 = vsyncpa [#allocation4], 0
    // Predicated region
    $region2: #{tpu_custom_call.1} parent=1 // pred_check
      _
    $region3: #{tpu_custom_call.1} parent=1 // pred_check_branch
      %12 = sbr.rel (0) target = $region5
    $region4: #{tpu_custom_call.1} parent=1 // pred_region
      %s14 = ssub.s32 128, 128
      %15 = vsyncadd [#allocation3], %s14
      %s17 = sshll.u32 [#allocation2], 4
      %s18 = int_to_ptr.vmem [resolvable:$true] %s17
      %20 = dma.hbm_to_vmem [thread:$0]  %s0, 128, %s18, [#allocation3]
    $region5: #{tpu_custom_call.1} parent=1 // pred_fallthru
      _
    // Predicated region
    $region6: #{tpu_custom_call.1} parent=1 // pred_check
      _
    $region7: #{tpu_custom_call.1} parent=1 // pred_check_branch
      %22 = sbr.rel (0) target = $region9
    $region8: #{tpu_custom_call.1} parent=1 // pred_region
      %s24 = ssub.s32 512, 512
      %25 = vsyncadd [#allocation6], %s24
      %s26 = sshll.u32 [#allocation5], 4
      %s27 = int_to_ptr.vmem [resolvable:$true] %s26
      %32 = dma.hbm_to_vmem [thread:$0]  %s1, 512, %s27, [#allocation6], 256, 256, 16
    $region9: #{tpu_custom_call.1} parent=1 // pred_fallthru
      _
    // Predicated region
    $region10: #{tpu_custom_call.1} parent=1 // pred_check
      _
    $region11: #{tpu_custom_call.1} parent=1 // pred_check_branch
      %34 = sbr.rel (0) target = $region13
    $region12: #{tpu_custom_call.1} parent=1 // pred_region
      %s36 = ssub.s32 2432, 2432
      %37 = vsyncadd [#allocation6], %s36
      %s38 = sshll.u32 [#allocation7], 4
      %s39 = int_to_ptr.vmem [resolvable:$true] %s38
      %44 = dma.hbm_to_vmem [thread:$0]  %s2, 2432, %s39, [#allocation6], 128, 128, 8
    $region13: #{tpu_custom_call.1} parent=1 // pred_fallthru
      _
    // Predicated region
    $region14: #{tpu_custom_call.1} parent=1 // pred_check
      _
    $region15: #{tpu_custom_call.1} parent=1 // pred_check_branch
      %46 = sbr.rel (0) target = $region17
    $region16: #{tpu_custom_call.1} parent=1 // pred_region
      %47 = dma.done [#allocation3], 128
    $region17: #{tpu_custom_call.1} parent=1 // pred_fallthru
      _
    // Predicated region
    $region18: #{tpu_custom_call.1} parent=1 // pred_check
      _
    $region19: #{tpu_custom_call.1} parent=1 // pred_check_branch
      %49 = sbr.rel (0) target = $region21
    $region20: #{tpu_custom_call.1} parent=1 // pred_region
      %50 = dma.done [#allocation6], 512
    $region21: #{tpu_custom_call.1} parent=1 // pred_fallthru
      _
    // Predicated region
    $region22: #{tpu_custom_call.1} parent=1 // pred_check
      _
    $region23: #{tpu_custom_call.1} parent=1 // pred_check_branch
      %52 = sbr.rel (0) target = $region25
    $region24: #{tpu_custom_call.1} parent=1 // pred_region
      %53 = dma.done [#allocation6], 2432
    $region25: #{tpu_custom_call.1} parent=1 // pred_fallthru
      _
    %v55 = vld [vmem:[#allocation2] sm:$0xff]
    %v56 = vpack.c.bf16 %v55, %v55
    %v57 = vld [vmem:[#allocation7] sm:$0xf]
    %v58 = vld [vmem:[#allocation7 + $0x8] sm:$0xf]
    %v61 = vunpack.c.l.b16 %v57
    %v62 = vunpack.c.l.b16 %v58
    %v63 = vpack.c.b16 %v62, %v61
    %vm65 = vcmask 130048
    %v67 = vsel %vm65, %v56, 0
    %69 = vmatprep.subr.bf16.mxu0 0
    %70 = vmatpush1.bf16.msra.mxu0 %v63
    %71 = vmatprep.subr.bf16.mxu0 0
    %72 = vmatpush1.bf16.msra.mxu0 0
    %73 = vmatprep.subr.bf16.mxu0 0
    %74 = vmatpush1.bf16.msra.mxu0 0
    %75 = vmatprep.subr.bf16.mxu0 0
    %76 = vmatpush1.bf16.msra.mxu0 0
    %77 = vmatprep.subr.bf16.mxu0 0
    %78 = vmatpush1.bf16.msra.mxu0 0
    %79 = vmatprep.subr.bf16.mxu0 0
    %80 = vmatpush1.bf16.msra.mxu0 0
    %81 = vmatprep.subr.bf16.mxu0 0
    %82 = vmatpush1.bf16.msra.mxu0 0
    %83 = vmatprep.subr.bf16.mxu0 0
    %84 = vmatpush1.bf16.msra.mxu0 0
    %85 = vmatprep.subr.bf16.mxu0 0
    %86 = vmatpush1.bf16.msra.mxu0 0
    %87 = vmatprep.subr.bf16.mxu0 0
    %88 = vmatpush1.bf16.msra.mxu0 0
    %89 = vmatprep.subr.bf16.mxu0 0
    %90 = vmatpush1.bf16.msra.mxu0 0
    %91 = vmatprep.subr.bf16.mxu0 0
    %92 = vmatpush1.bf16.msra.mxu0 0
    %93 = vmatprep.subr.bf16.mxu0 0
    %94 = vmatpush1.bf16.msra.mxu0 0
    %95 = vmatprep.subr.bf16.mxu0 0
    %96 = vmatpush1.bf16.msra.mxu0 0
    %97 = vmatprep.subr.bf16.mxu0 0
    %98 = vmatpush1.bf16.msra.mxu0 0
    %99 = vmatprep.subr.bf16.mxu0 0
    %100 = vmatpush1.bf16.msra.mxu0 0
    %101 = vmatprep.mubr.bf16.mxu0 0
    %102 = vmatmul.mubr.bf16.gmra.mrb[0].mxu0 %v67
    %v103 = vpop.f32.mrb[0].mxu0
    %v104 = vadd.f32 0.0, %v103
    %v105 = vpop.f32.mrb[0].mxu0
    %v106 = vpop.f32.mrb[0].mxu0
    %v107 = vpop.f32.mrb[0].mxu0
    %108 = vdwg.mxu0
    %v109 = vrot.slane %v104, 4
    %v110 = vadd.f32 %v104, %v109
    %v111 = vrot.slane %v110, 2
    %v112 = vadd.f32 %v110, %v111
    %v113 = vrot.slane %v112, 1
    %v114 = vadd.f32 %v112, %v113
    %v115 = vmul.f32 %v104, %v104
    %v116 = vrot.slane %v115, 4
    %v117 = vadd.f32 %v115, %v116
    %v118 = vrot.slane %v117, 2
    %v119 = vadd.f32 %v117, %v118
    %v120 = vrot.slane %v119, 1
    %v121 = vadd.f32 %v119, %v120
    %v122 = vmul.f32 %v114, 0.125
    %v123 = vmul.f32 %v121, 0.125
    %v124 = vmul.f32 %v122, %v122
    %v125 = vsub.f32 %v123, %v124
    %v126 = vmax.f32 %v125, 0.0
    %v127 = vld [vmem:[#allocation5] ss:$0 sm:$0xff]
    %v128 = vld [vmem:[#allocation5 + $0x1] ss:$0 sm:$0xff]
    %v129 = vsub.f32 %v104, %v122
    %v130 = vadd.f32 %v126, 1e-05
    %v131 = vrsqrt.pop %v130
    %v132 = vmul.f32 %v129, %v131
    %v133 = vmul.f32 %v132, %v127
    %v134 = vadd.f32 %v133, %v128
    %vm135 = vcmp.gt.f32.partialorder %v134, 0.0
    %v136 = vmul.f32 %v134, 0.01
    %v137 = vsel %vm135, %v134, %v136
    %v138 = vld [vmem:[#allocation5 + $0x3] ss:$0 sm:$0xff]
    %140 = vrot.lane.b32.xlu0 %v55, 112
    %v141 = vpop.permute.xlu0 %140
    %v143 = vmul.f32 %v138, %v141
    %v144 = vld [vmem:[#allocation5 + $0x4] ss:$0 sm:$0xff]
    %145 = vrot.lane.b32.xlu0 %v55, 111
    %v146 = vpop.permute.xlu0 %145
    %v148 = vmul.f32 %v144, %v146
    %v149 = vadd.f32 %v143, %v148
    %v150 = vld [vmem:[#allocation5 + $0x5] ss:$0 sm:$0xff]
    %151 = vrot.lane.b32.xlu0 %v55, 110
    %v152 = vpop.permute.xlu0 %151
    %v154 = vmul.f32 %v150, %v152
    %v155 = vadd.f32 %v149, %v154
    %vm156 = vcmask 80896
    %v157 = vsel %vm156, %v155, -inf
    %158 = vmax.xlane.f32.xlu0 %v157
    %v159 = vpop.xlane.xlu0 %158
    %v160 = vld [vmem:[#allocation5 + $0x6] ss:$0 sm:$0xff]
    %v161 = vmul.f32 %v160, %v141
    %v162 = vld [vmem:[#allocation5 + $0x7] ss:$0 sm:$0xff]
    %v163 = vmul.f32 %v162, %v146
    %v164 = vadd.f32 %v161, %v163
    %v165 = vld [vmem:[#allocation5 + $0x10] ss:$0 sm:$0xff]
    %v166 = vmul.f32 %v165, %v152
    %v167 = vadd.f32 %v164, %v166
    %v168 = vsel %vm156, %v167, -inf
    %169 = vmax.xlane.f32.xlu0 %v168
    %v170 = vpop.xlane.xlu0 %169
    %v171 = vld [vmem:[#allocation5 + $0x11] ss:$0 sm:$0xff]
    %v172 = vmul.f32 %v171, %v141
    %v173 = vld [vmem:[#allocation5 + $0x12] ss:$0 sm:$0xff]
    %v174 = vmul.f32 %v173, %v146
    %v175 = vadd.f32 %v172, %v174
    %v176 = vld [vmem:[#allocation5 + $0x13] ss:$0 sm:$0xff]
    %v177 = vmul.f32 %v176, %v152
    %v178 = vadd.f32 %v175, %v177
    %v179 = vsel %vm156, %v178, -inf
    %180 = vmax.xlane.f32.xlu0 %v179
    %v181 = vpop.xlane.xlu0 %180
    %v182 = vld [vmem:[#allocation5 + $0x14] ss:$0 sm:$0xff]
    %v183 = vmul.f32 %v182, %v141
    %v184 = vld [vmem:[#allocation5 + $0x15] ss:$0 sm:$0xff]
    %v185 = vmul.f32 %v184, %v146
    %v186 = vadd.f32 %v183, %v185
    %v187 = vld [vmem:[#allocation5 + $0x16] ss:$0 sm:$0xff]
    %v188 = vmul.f32 %v187, %v152
    %v189 = vadd.f32 %v186, %v188
    %v190 = vsel %vm156, %v189, -inf
    %191 = vmax.xlane.f32.xlu0 %v190
    %v192 = vpop.xlane.xlu0 %191
    %vm193 = vcmask 7168
    %v194 = vsel %vm193, %v159, %v170
    %vm195 = vcmask 15360
    %v196 = vsel %vm195, %v194, %v181
    %vm197 = vcmask 23552
    %v198 = vsel %vm197, %v196, %v192
    %v199 = vld [vmem:[#allocation7 + $0x10] sm:$0xff]
    %v200 = vld [vmem:[#allocation7 + $0x18] sm:$0xff]
    %v201 = vld [vmem:[#allocation7 + $0x20] sm:$0xff]
    %v202 = vld [vmem:[#allocation7 + $0x28] sm:$0xff]
    %v203 = vld [vmem:[#allocation7 + $0x30] sm:$0xff]
    %v204 = vld [vmem:[#allocation7 + $0x38] sm:$0xff]
    %v205 = vld [vmem:[#allocation7 + $0x40] sm:$0xff]
    %v206 = vld [vmem:[#allocation7 + $0x48] sm:$0xff]
    %v207 = vld [vmem:[#allocation7 + $0x50] sm:$0xff]
    %v208 = vld [vmem:[#allocation7 + $0x58] sm:$0xff]
    %v209 = vld [vmem:[#allocation7 + $0x60] sm:$0xff]
    %v210 = vld [vmem:[#allocation7 + $0x68] sm:$0xff]
    %v211 = vld [vmem:[#allocation7 + $0x70] sm:$0xff]
    %v212 = vld [vmem:[#allocation7 + $0x78] sm:$0xff]
    %v213 = vld [vmem:[#allocation7 + $0x80] sm:$0xff]
    %v214 = vld [vmem:[#allocation7 + $0x88] sm:$0xff]
    %v215 = vld [vmem:[#allocation7 + $0x90] sm:$0x33]
    %s216 = scalar_lea.vmem [#allocation5], 2
    %v217 = vld [vmem:[%s216] ss:$8 sm:$0x3]
    %v218 = vpack.c.bf16 %v137, %v137
    %v219 = vpack.c.bf16 %v198, %v198
    %v221 = vunpack.c.l.b16 %v215
    %v222 = vunpack.c.h.b16 %v215
    %v223 = vpack.c.b16 %v221, %v221
    %v224 = vpack.c.b16 %v222, %v222
    %vm225 = vcmask 31744
    %v227 = vsel %vm225, %v219, 0
    %vm229 = vcmask 1041408
    %v231 = vsel %vm229, %v223, 0
    %v234 = vsel %vm229, %v224, 0
    %236 = vmatprep.subr.bf16.mxu0 %v234
    %237 = vmatpush1.bf16.msra.mxu0 %v231
    %238 = vmatprep.subr.bf16.mxu0 0
    %239 = vmatpush1.bf16.msra.mxu0 0
    %240 = vmatprep.subr.bf16.mxu0 0
    %241 = vmatpush1.bf16.msra.mxu0 0
    %242 = vmatprep.subr.bf16.mxu0 0
    %243 = vmatpush1.bf16.msra.mxu0 0
    %244 = vmatprep.subr.bf16.mxu0 0
    %245 = vmatpush1.bf16.msra.mxu0 0
    %246 = vmatprep.subr.bf16.mxu0 0
    %247 = vmatpush1.bf16.msra.mxu0 0
    %248 = vmatprep.subr.bf16.mxu0 0
    %249 = vmatpush1.bf16.msra.mxu0 0
    %250 = vmatprep.subr.bf16.mxu0 0
    %251 = vmatpush1.bf16.msra.mxu0 0
    %252 = vmatprep.subr.bf16.mxu0 0
    %253 = vmatpush1.bf16.msra.mxu0 0
    %254 = vmatprep.subr.bf16.mxu0 0
    %255 = vmatpush1.bf16.msra.mxu0 0
    %256 = vmatprep.subr.bf16.mxu0 0
    %257 = vmatpush1.bf16.msra.mxu0 0
    %258 = vmatprep.subr.bf16.mxu0 0
    %259 = vmatpush1.bf16.msra.mxu0 0
    %260 = vmatprep.subr.bf16.mxu0 0
    %261 = vmatpush1.bf16.msra.mxu0 0
    %262 = vmatprep.subr.bf16.mxu0 0
    %263 = vmatpush1.bf16.msra.mxu0 0
    %264 = vmatprep.subr.bf16.mxu0 0
    %265 = vmatpush1.bf16.msra.mxu0 0
    %266 = vmatprep.subr.bf16.mxu0 0
    %267 = vmatpush1.bf16.msra.mxu0 0
    %268 = vmatprep.mubr.bf16.mxu0 0
    %269 = vmatmul.mubr.bf16.gmra.mrb[0].mxu0 %v227
    %v270 = vpop.f32.mrb[0].mxu0
    %v271 = vadd.f32 0.0, %v270
    %v272 = vpop.f32.mrb[0].mxu0
    %v273 = vadd.f32 0.0, %v272
    %v274 = vpop.f32.mrb[0].mxu0
    %v275 = vpop.f32.mrb[0].mxu0
    %276 = vdwg.mxu0
    %v293 = vunpack.c.l.b16 %v199
    %v294 = vunpack.c.h.b16 %v199
    %v295 = vunpack.c.l.b16 %v200
    %v296 = vunpack.c.h.b16 %v200
    %v297 = vunpack.c.l.b16 %v201
    %v298 = vunpack.c.h.b16 %v201
    %v299 = vunpack.c.l.b16 %v202
    %v300 = vunpack.c.h.b16 %v202
    %v301 = vunpack.c.l.b16 %v203
    %v302 = vunpack.c.h.b16 %v203
    %v303 = vunpack.c.l.b16 %v204
    %v304 = vunpack.c.h.b16 %v204
    %v305 = vunpack.c.l.b16 %v205
    %v306 = vunpack.c.h.b16 %v205
    %v307 = vunpack.c.l.b16 %v206
    %v308 = vunpack.c.h.b16 %v206
    %v309 = vunpack.c.l.b16 %v207
    %v310 = vunpack.c.h.b16 %v207
    %v311 = vunpack.c.l.b16 %v208
    %v312 = vunpack.c.h.b16 %v208
    %v313 = vunpack.c.l.b16 %v209
    %v314 = vunpack.c.h.b16 %v209
    %v315 = vunpack.c.l.b16 %v210
    %v316 = vunpack.c.h.b16 %v210
    %v317 = vunpack.c.l.b16 %v211
    %v318 = vunpack.c.h.b16 %v211
    %v319 = vunpack.c.l.b16 %v212
    %v320 = vunpack.c.h.b16 %v212
    %v321 = vunpack.c.l.b16 %v213
    %v322 = vunpack.c.h.b16 %v213
    %v323 = vunpack.c.l.b16 %v214
    %v324 = vunpack.c.h.b16 %v214
    %v325 = vpack.c.b16 %v295, %v293
    %v326 = vpack.c.b16 %v296, %v294
    %v327 = vpack.c.b16 %v299, %v297
    %v328 = vpack.c.b16 %v300, %v298
    %v329 = vpack.c.b16 %v303, %v301
    %v330 = vpack.c.b16 %v304, %v302
    %v331 = vpack.c.b16 %v307, %v305
    %v332 = vpack.c.b16 %v308, %v306
    %v333 = vpack.c.b16 %v311, %v309
    %v334 = vpack.c.b16 %v312, %v310
    %v335 = vpack.c.b16 %v315, %v313
    %v336 = vpack.c.b16 %v316, %v314
    %v337 = vpack.c.b16 %v319, %v317
    %v338 = vpack.c.b16 %v320, %v318
    %v339 = vpack.c.b16 %v323, %v321
    %v340 = vpack.c.b16 %v324, %v322
    %357 = vmatprep.subr.bf16.mxu0 %v326
    %358 = vmatpush1.bf16.msra.mxu0 %v325
    %359 = vmatprep.subr.bf16.mxu0 %v328
    %360 = vmatpush1.bf16.msra.mxu0 %v327
    %361 = vmatprep.subr.bf16.mxu0 %v330
    %362 = vmatpush1.bf16.msra.mxu0 %v329
    %363 = vmatprep.subr.bf16.mxu0 %v332
    %364 = vmatpush1.bf16.msra.mxu0 %v331
    %365 = vmatprep.subr.bf16.mxu0 %v334
    %366 = vmatpush1.bf16.msra.mxu0 %v333
    %367 = vmatprep.subr.bf16.mxu0 %v336
    %368 = vmatpush1.bf16.msra.mxu0 %v335
    %369 = vmatprep.subr.bf16.mxu0 %v338
    %370 = vmatpush1.bf16.msra.mxu0 %v337
    %371 = vmatprep.subr.bf16.mxu0 %v340
    %372 = vmatpush1.bf16.msra.mxu0 %v339
    %373 = vmatprep.subr.bf16.mxu0 0
    %374 = vmatpush1.bf16.msra.mxu0 0
    %375 = vmatprep.subr.bf16.mxu0 0
    %376 = vmatpush1.bf16.msra.mxu0 0
    %377 = vmatprep.subr.bf16.mxu0 0
    %378 = vmatpush1.bf16.msra.mxu0 0
    %379 = vmatprep.subr.bf16.mxu0 0
    %380 = vmatpush1.bf16.msra.mxu0 0
    %381 = vmatprep.subr.bf16.mxu0 0
    %382 = vmatpush1.bf16.msra.mxu0 0
    %383 = vmatprep.subr.bf16.mxu0 0
    %384 = vmatpush1.bf16.msra.mxu0 0
    %385 = vmatprep.subr.bf16.mxu0 0
    %386 = vmatpush1.bf16.msra.mxu0 0
    %387 = vmatprep.subr.bf16.mxu0 0
    %388 = vmatpush1.bf16.msra.mxu0 0
    %389 = vmatprep.mubr.bf16.mxu0 0
    %390 = vmatmul.mubr.bf16.gmra.mrb[0].mxu0 %v218
    %v391 = vpop.f32.mrb[0].mxu0
    %v392 = vadd.f32 %v271, %v391
    %v393 = vpop.f32.mrb[0].mxu0
    %v394 = vadd.f32 %v273, %v393
    %v395 = vpop.f32.mrb[0].mxu0
    %v396 = vpop.f32.mrb[0].mxu0
    %397 = vdwg.mxu0
    %v399 = vlaneseq
    %v400 = vshrl.u32 %v399, 7
    %v401 = vsub.s32 0, %v400
    %v402 = vrot.slane %v217, %v401
    %v403 = vlaneseq
    %v404 = vshrl.u32 %v403, 7
    %v405 = vsub.s32 1, %v404
    %v406 = vrot.slane %v217, %v405
    %v409 = vadd.f32 %v392, %v402
    %v410 = vadd.f32 %v394, %v406
    %vm411 = vcmp.gt.f32.partialorder %v409, 0.0
    %vm412 = vcmp.gt.f32.partialorder %v410, 0.0
    %v413 = vmul.f32 %v409, 0.01
    %v414 = vmul.f32 %v410, 0.01
    %v415 = vsel %vm411, %v409, %v413
    %v416 = vsel %vm412, %v410, %v414
    %417 = vst [vmem:[#allocation8] sm:$0xff] %v415
    %418 = vst [vmem:[#allocation8 + $0x8] sm:$0xff] %v416
    // Predicated region
    $region26: #{tpu_custom_call.1} parent=1 // pred_check
      _
    $region27: #{tpu_custom_call.1} parent=1 // pred_check_branch
      %420 = sbr.rel (0) target = $region29
    $region28: #{tpu_custom_call.1} parent=1 // pred_region
      %s422 = ssub.s32 256, 256
      %423 = vsyncadd [#allocation4], %s422
      %s425 = sshll.u32 [#allocation8], 4
      %s426 = int_to_ptr.vmem [resolvable:$true] %s425
      %428 = dma.vmem_to_hbm [thread:$0]  %s426, 256, %s3, [#allocation4]
    $region29: #{tpu_custom_call.1} parent=1 // pred_fallthru
      _
    // Predicated region
    $region30: #{tpu_custom_call.1} parent=1 // pred_check
      _
    $region31: #{tpu_custom_call.1} parent=1 // pred_check_branch
      %430 = sbr.rel (0) target = $region33
    $region32: #{tpu_custom_call.1} parent=1 // pred_region
      %431 = dma.done [#allocation4], 256
    $region33: #{tpu_custom_call.1} parent=1 // pred_fallthru
      _
    %432 = vsyncpa [#allocation3], 1
    %433 = vsyncpa [#allocation6], 1
    %434 = vsyncpa [#allocation4], 1

</llo_original>
